<compile_context>
chip_gen: v7x
topology: tpu7x:2x2x1
jax: 0.10.0
libtpu: 0.0.40
codegen_flags: <defaults>
</compile_context>

<pallas_src>
import jax
import jax.numpy as jnp
from jax.experimental import pallas as pl
from jax.experimental.pallas import tpu as pltpu


def _se_block_kernel(x_ref, w1_ref, b1_ref, w2_ref, b2_ref, o_ref):
    """Single gridless invocation.

    x_ref : (B, C, S)   input (native dtype)
    w1_ref: (rr, C)     FC1 weight (nn.Linear orientation: out x in)
    b1_ref: (1, rr)
    w2_ref: (C, rr)     FC2 weight
    b2_ref: (1, C)
    o_ref : (B, C)      channel attention (sigmoid gate)
    """
    # Global average pool over spatial dims: f32 accumulation, lane reduce.
    x = x_ref[...].astype(jnp.float32)                  # (B, C, S)
    gap = jnp.mean(x, axis=-1)                           # (B, C)

    # FC1 + ReLU.  Tiny contraction -> VPU multiply + lane reduce (no MXU).
    # h[b, j] = sum_c gap[b, c] * w1[j, c]
    w1 = w1_ref[...].astype(jnp.float32)                 # (rr, C)
    h = jnp.sum(gap[:, None, :] * w1[None, :, :], axis=-1)   # (B, rr)
    h = h + b1_ref[...].astype(jnp.float32)
    h = jnp.maximum(h, 0.0)

    # FC2.  z[b, k] = sum_j h[b, j] * w2[k, j]
    w2 = w2_ref[...].astype(jnp.float32)                 # (C, rr)
    z = jnp.sum(h[:, None, :] * w2[None, :, :], axis=-1)     # (B, C)
    z = z + b2_ref[...].astype(jnp.float32)

    # Sigmoid: exp on EUP, approximate reciprocal on EUP (no VPU divide).
    o_ref[...] = pl.reciprocal(1.0 + jnp.exp(-z), approx=True)


def se_block(x, params):
    """x: (B, C, D, W, H) -> (B, C) channel attention (float32)."""
    B, C, D, W, H = x.shape
    S = D * W * H
    x3 = x.reshape(B, C, S)                     # lane-dense GAP input, native dtype

    w1 = params['fc1_w']                        # (rr, C)
    b1 = params['fc1_b'].reshape(1, -1)         # (1, rr)
    w2 = params['fc2_w']                        # (C, rr)
    b2 = params['fc2_b'].reshape(1, -1)         # (1, C)

    vmem_spec = lambda: pl.BlockSpec(memory_space=pltpu.MemorySpace.VMEM)

    return pl.pallas_call(
        _se_block_kernel,
        out_shape=jax.ShapeDtypeStruct((B, C), jnp.float32),
        in_specs=[vmem_spec() for _ in range(5)],
        out_specs=vmem_spec(),
    )(x3, w1, b1, w2, b2)


def se_reference(x, params):
    """Pure-JAX mirror of the PyTorch SeBlock forward."""
    gap = jnp.mean(x.astype(jnp.float32), axis=(2, 3, 4))             # (B, C)
    h = jnp.maximum(gap @ params['fc1_w'].T + params['fc1_b'], 0.0)   # (B, rr)
    return jax.nn.sigmoid(h @ params['fc2_w'].T + params['fc2_b'])    # (B, C)


if __name__ == "__main__":
    B, C, D, W, H = 2, 4, 4, 8, 8   # out_chans=4, spatial 4x8x8 -> S=256
    RR = 2                          # reduction ratio

    key = jax.random.PRNGKey(0)
    ks = jax.random.split(key, 5)
    params = {
        'fc1_w': 0.1 * jax.random.normal(ks[0], (RR, C), jnp.float32),
        'fc1_b': 0.1 * jax.random.normal(ks[1], (RR,), jnp.float32),
        'fc2_w': 0.1 * jax.random.normal(ks[2], (C, RR), jnp.float32),
        'fc2_b': 0.1 * jax.random.normal(ks[3], (C,), jnp.float32),
    }
    x = jax.random.normal(ks[4], (B, C, D, W, H), jnp.float32)

    out = jax.block_until_ready(se_block(x, params))
    ref = se_reference(x, params)

    assert out.shape == (B, C), out.shape
    # Tolerance accounts for the intentional approximate EUP reciprocal in the
    # sigmoid (relative error ~1e-3 worst case on these values).
    max_err = float(jnp.max(jnp.abs(out - ref)))
    assert jnp.allclose(out, ref, atol=5e-3, rtol=5e-3), max_err
    print("KERNEL_OK")
</pallas_src>

<mosaic_0001>
module attributes {stable_mosaic.version = 11 : i64} {
  func.func @_se_block_kernel(%arg0: memref<2x4x256xf32, #tpu.memory_space<vmem>>, %arg1: memref<2x4xf32, #tpu.memory_space<vmem>>, %arg2: memref<1x2xf32, #tpu.memory_space<vmem>>, %arg3: memref<4x2xf32, #tpu.memory_space<vmem>>, %arg4: memref<1x4xf32, #tpu.memory_space<vmem>>, %arg5: memref<2x4xf32, #tpu.memory_space<vmem>>) attributes {dimension_semantics = [], scalar_prefetch = 0 : i64, scratch_operands = 0 : i64, tpu.core_type = #tpu.core_type<tc>} {
    %c0 = arith.constant 0 : index
    %c0_0 = arith.constant 0 : index
    %c0_1 = arith.constant 0 : index
    %0 = vector.load %arg0[%c0, %c0_0, %c0_1] : memref<2x4x256xf32, #tpu.memory_space<vmem>>, vector<2x4x256xf32>
    %cst = arith.constant dense<0.000000e+00> : vector<2x4xf32>
    %1 = vector.multi_reduction <add>, %0, %cst [2] : vector<2x4x256xf32> to vector<2x4xf32>
    %cst_2 = arith.constant 2.560000e+02 : f32
    %2 = vector.broadcast %cst_2 : f32 to vector<2x4xf32>
    %3 = arith.divf %1, %2 : vector<2x4xf32>
    %c0_3 = arith.constant 0 : index
    %c0_4 = arith.constant 0 : index
    %4 = vector.load %arg1[%c0_3, %c0_4] : memref<2x4xf32, #tpu.memory_space<vmem>>, vector<2x4xf32>
    %5 = vector.shape_cast %3 : vector<2x4xf32> to vector<2x1x4xf32>
    %6 = vector.shape_cast %4 : vector<2x4xf32> to vector<1x2x4xf32>
    %7 = vector.broadcast %5 : vector<2x1x4xf32> to vector<2x2x4xf32>
    %8 = vector.broadcast %6 : vector<1x2x4xf32> to vector<2x2x4xf32>
    %9 = arith.mulf %7, %8 : vector<2x2x4xf32>
    %cst_5 = arith.constant dense<0.000000e+00> : vector<2x2xf32>
    %10 = vector.multi_reduction <add>, %9, %cst_5 [2] : vector<2x2x4xf32> to vector<2x2xf32>
    %c0_6 = arith.constant 0 : index
    %c0_7 = arith.constant 0 : index
    %11 = vector.load %arg2[%c0_6, %c0_7] : memref<1x2xf32, #tpu.memory_space<vmem>>, vector<1x2xf32>
    %12 = vector.broadcast %11 : vector<1x2xf32> to vector<2x2xf32>
    %13 = arith.addf %10, %12 : vector<2x2xf32>
    %cst_8 = arith.constant 0.000000e+00 : f32
    %14 = vector.broadcast %cst_8 : f32 to vector<2x2xf32>
    %15 = arith.maximumf %13, %14 : vector<2x2xf32>
    %c0_9 = arith.constant 0 : index
    %c0_10 = arith.constant 0 : index
    %16 = vector.load %arg3[%c0_9, %c0_10] : memref<4x2xf32, #tpu.memory_space<vmem>>, vector<4x2xf32>
    %17 = vector.shape_cast %15 : vector<2x2xf32> to vector<2x1x2xf32>
    %18 = vector.shape_cast %16 : vector<4x2xf32> to vector<1x4x2xf32>
    %19 = vector.broadcast %17 : vector<2x1x2xf32> to vector<2x4x2xf32>
    %20 = vector.broadcast %18 : vector<1x4x2xf32> to vector<2x4x2xf32>
    %21 = arith.mulf %19, %20 : vector<2x4x2xf32>
    %cst_11 = arith.constant dense<0.000000e+00> : vector<2x4xf32>
    %22 = vector.multi_reduction <add>, %21, %cst_11 [2] : vector<2x4x2xf32> to vector<2x4xf32>
    %c0_12 = arith.constant 0 : index
    %c0_13 = arith.constant 0 : index
    %23 = vector.load %arg4[%c0_12, %c0_13] : memref<1x4xf32, #tpu.memory_space<vmem>>, vector<1x4xf32>
    %24 = vector.broadcast %23 : vector<1x4xf32> to vector<2x4xf32>
    %25 = arith.addf %22, %24 : vector<2x4xf32>
    %cst_14 = arith.constant 0.000000e+00 : f32
    %26 = vector.broadcast %cst_14 : f32 to vector<2x4xf32>
    %27 = arith.subf %26, %25 : vector<2x4xf32>
    %28 = math.exp %27 : vector<2x4xf32>
    %cst_15 = arith.constant 1.000000e+00 : f32
    %29 = vector.broadcast %cst_15 : f32 to vector<2x4xf32>
    %30 = arith.addf %29, %28 : vector<2x4xf32>
    %31 = tpu.reciprocal %30 {approx = true} : vector<2x4xf32> -> vector<2x4xf32>
    %c0_16 = arith.constant 0 : index
    %c0_17 = arith.constant 0 : index
    %32 = vector.load %arg5[%c0_16, %c0_17] : memref<2x4xf32, #tpu.memory_space<vmem>>, vector<2x4xf32>
    tpu.vector_store %arg5[%c0_16, %c0_17], %31 {strides = array<i32>} : memref<2x4xf32, #tpu.memory_space<vmem>>, vector<2x4xf32>,
    return
  }
}

</mosaic_0001>

<llo_original>
// kernel: tpu_custom_call.1
$region0: #{tpu_custom_call.1}
  #allocation0 [shape = 'u32[]', space=smem, size = 0x4, offset = 0x4, fixed_abs, tag = 'smem constant byte address 0x4 - core index']
  #allocation1 [shape = 'u32[144,128]{1,0:T(1,128)}', space=vmem, size = 0x12000, scoped, tag = 'internal scratch']
  %s0 = inlined_call_operand.hbm [shape: f32[2,4,256], index: 0, kind: input, shape index: {}]
  %s1 = inlined_call_operand.vmem [shape: f32[2,4], index: 1, kind: input, shape index: {}]
  %s2 = inlined_call_operand.vmem [shape: f32[1,2], index: 2, kind: input, shape index: {}]
  %s3 = inlined_call_operand.vmem [shape: f32[4,2], index: 3, kind: input, shape index: {}]
  %s4 = inlined_call_operand.vmem [shape: f32[1,4], index: 4, kind: input, shape index: {}]
  %s5 = inlined_call_operand.hbm [shape: f32[2,4], index: 5, kind: output, shape index: {}]
  %s6 = sld [smem:[#allocation0]]
  $region34: #{tpu_custom_call.1} parent=0
    _
  %s8 = ssub.s32 1, %s6
  %s9 = scalar_select 0, %s8, %s6
  $region1: #{tpu_custom_call.1} parent=0
    #allocation2 [shape = 'u8[8192]{0}', space=vmem, size = 0x2000, scoped, tag = 'input window, operand 0, single buffered']
    #allocation3 [shape = 's32[1]{0}', space=sflag, size = 0x4, scoped, tag = 'scoped memory for tpu_custom_call.1']
    #allocation4 [shape = 's32[1]{0}', space=sflag, size = 0x4, scoped, tag = 'scoped memory for tpu_custom_call.1']
    #allocation5 [shape = 'u8[1024]{0}', space=vmem, size = 0x400, scoped, tag = 'output window, operand 0, single buffered']
    %10 = vsyncpa [#allocation3], 0
    %11 = vsyncpa [#allocation4], 0
    // Predicated region
    $region2: #{tpu_custom_call.1} parent=1 // pred_check
      _
    $region3: #{tpu_custom_call.1} parent=1 // pred_check_branch
      %13 = sbr.rel (0) target = $region5
    $region4: #{tpu_custom_call.1} parent=1 // pred_region
      %s15 = ssub.s32 256, 256
      %16 = vsyncadd [#allocation3], %s15
      %s17 = sshll.u32 [#allocation2], 4
      %s18 = int_to_ptr.vmem [resolvable:$true] %s17
      %23 = dma.hbm_to_vmem [thread:$0]  %s0, 256, %s18, [#allocation3], 128, 128, 8
    $region5: #{tpu_custom_call.1} parent=1 // pred_fallthru
      _
    // Predicated region
    $region6: #{tpu_custom_call.1} parent=1 // pred_check
      _
    $region7: #{tpu_custom_call.1} parent=1 // pred_check_branch
      %25 = sbr.rel (0) target = $region9
    $region8: #{tpu_custom_call.1} parent=1 // pred_region
      _
    $region9: #{tpu_custom_call.1} parent=1 // pred_fallthru
      _
    // Predicated region
    $region10: #{tpu_custom_call.1} parent=1 // pred_check
      _
    $region11: #{tpu_custom_call.1} parent=1 // pred_check_branch
      %27 = sbr.rel (0) target = $region13
    $region12: #{tpu_custom_call.1} parent=1 // pred_region
      _
    $region13: #{tpu_custom_call.1} parent=1 // pred_fallthru
      _
    // Predicated region
    $region14: #{tpu_custom_call.1} parent=1 // pred_check
      _
    $region15: #{tpu_custom_call.1} parent=1 // pred_check_branch
      %29 = sbr.rel (0) target = $region17
    $region16: #{tpu_custom_call.1} parent=1 // pred_region
      _
    $region17: #{tpu_custom_call.1} parent=1 // pred_fallthru
      _
    // Predicated region
    $region18: #{tpu_custom_call.1} parent=1 // pred_check
      _
    $region19: #{tpu_custom_call.1} parent=1 // pred_check_branch
      %31 = sbr.rel (0) target = $region21
    $region20: #{tpu_custom_call.1} parent=1 // pred_region
      _
    $region21: #{tpu_custom_call.1} parent=1 // pred_fallthru
      _
    // Predicated region
    $region22: #{tpu_custom_call.1} parent=1 // pred_check
      _
    $region23: #{tpu_custom_call.1} parent=1 // pred_check_branch
      %33 = sbr.rel (0) target = $region25
    $region24: #{tpu_custom_call.1} parent=1 // pred_region
      %34 = dma.done [#allocation3], 256
    $region25: #{tpu_custom_call.1} parent=1 // pred_fallthru
      _
    %v35 = vld [vmem:[#allocation2] sm:$0xff]
    %v36 = vld [vmem:[#allocation2 + $0x8] sm:$0xff]
    %v39 = vcombine.high %v35, %v35
    %v40 = vcombine.high %v36, %v36
    %vm43 = vcmask 1043456
    %v44 = vsel %vm43, %v35, 0.0
    %v45 = vsel %vm43, %v39, 0.0
    %v46 = vadd.f32 %v44, %v45
    %47 = vadd.xlane.f32.xlu0 %v46
    %v48 = vpop.xlane.xlu0 %47
    %v49 = vsel %vm43, %v36, 0.0
    %v50 = vsel %vm43, %v40, 0.0
    %v51 = vadd.f32 %v49, %v50
    %52 = vadd.xlane.f32.xlu0 %v51
    %v53 = vpop.xlane.xlu0 %52
    %v54 = vrcp.pop 256.0
    %v55 = vmul.f32 %v48, %v54
    %v56 = vmul.f32 %v53, %v54
    %v57 = vld [vmem:[%s1] sm:$0x3]
    %v59 = vlaneseq
    %v60 = vshrl.u32 %v59, 7
    %v61 = vsub.s32 0, %v60
    %v62 = vrot.slane %v57, %v61
    %64 = vbcast.lane.b32.xlu0 %v62, 256
    %v65 = vpop.permute.xlu0 %64
    %v66 = vlaneseq
    %v67 = vshrl.u32 %v66, 7
    %v68 = vsub.s32 1, %v67
    %v69 = vrot.slane %v57, %v68
    %71 = vbcast.lane.b32.xlu0 %v69, 256
    %v72 = vpop.permute.xlu0 %71
    %v75 = vmul.f32 %v55, %v65
    %v76 = vmul.f32 %v55, %v72
    %v77 = vmul.f32 %v56, %v65
    %v78 = vmul.f32 %v56, %v72
    %83 = vset.pattern.permute.xlu0 0
    %84 = vperm.xlu0 %83, %v75
    %v85 = vpop.permute.xlu0 %84
    %86 = vset.pattern.permute.xlu0 0
    %87 = vperm.xlu0 %86, %v76
    %v88 = vpop.permute.xlu0 %87
    %89 = vset.pattern.permute.xlu0 0
    %90 = vperm.xlu0 %89, %v77
    %v91 = vpop.permute.xlu0 %90
    %92 = vset.pattern.permute.xlu0 0
    %93 = vperm.xlu0 %92, %v78
    %v94 = vpop.permute.xlu0 %93
    %v95 = vlaneseq
    %v96 = vand.u32 %v95, 127
    %v97 = vlaneseq
    %v98 = vshrl.u32 %v97, 7
    %v99 = vsub.s32 %v96, %v98
    %v100 = vrot.slane %v85, %v99
    %v101 = vlaneseq
    %v102 = vshrl.u32 %v101, 7
    %v103 = vsub.s32 %v96, %v102
    %v104 = vrot.slane %v88, %v103
    %v105 = vlaneseq
    %v106 = vshrl.u32 %v105, 7
    %v107 = vsub.s32 %v96, %v106
    %v108 = vrot.slane %v91, %v107
    %v109 = vlaneseq
    %v110 = vshrl.u32 %v109, 7
    %v111 = vsub.s32 %v96, %v110
    %v112 = vrot.slane %v94, %v111
    %vm113 = vcmask 1041409
    %v114 = vsel %vm113, %v104, %v100
    %v115 = vsel %vm113, %v112, %v108
    %vm118 = vcmask 25600
    %v119 = vsel %vm118, %v114, 0.0
    %120 = vadd.xlane.f32.xlu0 %v119
    %v121 = vpop.xlane.xlu0 %120
    %v122 = vsel %vm118, %v115, 0.0
    %123 = vadd.xlane.f32.xlu0 %v122
    %v124 = vpop.xlane.xlu0 %123
    %v125 = vld [vmem:[%s2] sm:$0x1]
    %v127 = vlaneseq
    %v128 = vshrl.u32 %v127, 7
    %v129 = vsub.s32 0, %v128
    %v130 = vrot.slane %v125, %v129
    %132 = vbcast.lane.b32.xlu0 %v130, 256
    %v133 = vpop.permute.xlu0 %132
    %v135 = vadd.f32 %v121, %v133
    %v136 = vadd.f32 %v124, %v133
    %v137 = vmax.f32 %v135, 0.0
    %v138 = vmax.f32 %v136, 0.0
    %v139 = vld [vmem:[%s3] sm:$0xf]
    %v141 = vlaneseq
    %v142 = vshrl.u32 %v141, 7
    %v143 = vsub.s32 0, %v142
    %v144 = vrot.slane %v139, %v143
    %146 = vbcast.lane.b32.xlu0 %v144, 256
    %v147 = vpop.permute.xlu0 %146
    %v148 = vlaneseq
    %v149 = vshrl.u32 %v148, 7
    %v150 = vsub.s32 1, %v149
    %v151 = vrot.slane %v139, %v150
    %153 = vbcast.lane.b32.xlu0 %v151, 256
    %v154 = vpop.permute.xlu0 %153
    %v155 = vlaneseq
    %v156 = vshrl.u32 %v155, 7
    %v157 = vsub.s32 2, %v156
    %v158 = vrot.slane %v139, %v157
    %160 = vbcast.lane.b32.xlu0 %v158, 256
    %v161 = vpop.permute.xlu0 %160
    %v162 = vlaneseq
    %v163 = vshrl.u32 %v162, 7
    %v164 = vsub.s32 3, %v163
    %v165 = vrot.slane %v139, %v164
    %167 = vbcast.lane.b32.xlu0 %v165, 256
    %v168 = vpop.permute.xlu0 %167
    %v173 = vmul.f32 %v137, %v147
    %v174 = vmul.f32 %v137, %v154
    %v175 = vmul.f32 %v137, %v161
    %v176 = vmul.f32 %v137, %v168
    %v177 = vmul.f32 %v138, %v147
    %v178 = vmul.f32 %v138, %v154
    %v179 = vmul.f32 %v138, %v161
    %v180 = vmul.f32 %v138, %v168
    %189 = vset.pattern.permute.xlu0 0
    %190 = vperm.xlu0 %189, %v173
    %v191 = vpop.permute.xlu0 %190
    %192 = vset.pattern.permute.xlu0 0
    %193 = vperm.xlu0 %192, %v174
    %v194 = vpop.permute.xlu0 %193
    %195 = vset.pattern.permute.xlu0 0
    %196 = vperm.xlu0 %195, %v175
    %v197 = vpop.permute.xlu0 %196
    %198 = vset.pattern.permute.xlu0 0
    %199 = vperm.xlu0 %198, %v176
    %v200 = vpop.permute.xlu0 %199
    %201 = vset.pattern.permute.xlu0 0
    %202 = vperm.xlu0 %201, %v177
    %v203 = vpop.permute.xlu0 %202
    %204 = vset.pattern.permute.xlu0 0
    %205 = vperm.xlu0 %204, %v178
    %v206 = vpop.permute.xlu0 %205
    %207 = vset.pattern.permute.xlu0 0
    %208 = vperm.xlu0 %207, %v179
    %v209 = vpop.permute.xlu0 %208
    %210 = vset.pattern.permute.xlu0 0
    %211 = vperm.xlu0 %210, %v180
    %v212 = vpop.permute.xlu0 %211
    %v213 = vlaneseq
    %v214 = vshrl.u32 %v213, 7
    %v215 = vsub.s32 %v96, %v214
    %v216 = vrot.slane %v191, %v215
    %v217 = vlaneseq
    %v218 = vshrl.u32 %v217, 7
    %v219 = vsub.s32 %v96, %v218
    %v220 = vrot.slane %v194, %v219
    %v221 = vlaneseq
    %v222 = vshrl.u32 %v221, 7
    %v223 = vsub.s32 %v96, %v222
    %v224 = vrot.slane %v197, %v223
    %v225 = vlaneseq
    %v226 = vshrl.u32 %v225, 7
    %v227 = vsub.s32 %v96, %v226
    %v228 = vrot.slane %v200, %v227
    %v229 = vlaneseq
    %v230 = vshrl.u32 %v229, 7
    %v231 = vsub.s32 %v96, %v230
    %v232 = vrot.slane %v203, %v231
    %v233 = vlaneseq
    %v234 = vshrl.u32 %v233, 7
    %v235 = vsub.s32 %v96, %v234
    %v236 = vrot.slane %v206, %v235
    %v237 = vlaneseq
    %v238 = vshrl.u32 %v237, 7
    %v239 = vsub.s32 %v96, %v238
    %v240 = vrot.slane %v209, %v239
    %v241 = vlaneseq
    %v242 = vshrl.u32 %v241, 7
    %v243 = vsub.s32 %v96, %v242
    %v244 = vrot.slane %v212, %v243
    %v245 = vsel %vm113, %v220, %v216
    %vm246 = vcmask 1042434
    %v247 = vsel %vm246, %v224, %v245
    %vm248 = vcmask 1043459
    %v249 = vsel %vm248, %v228, %v247
    %v250 = vsel %vm113, %v236, %v232
    %v251 = vsel %vm246, %v240, %v250
    %v252 = vsel %vm248, %v244, %v251
    %vm255 = vcmask 11264
    %v256 = vsel %vm255, %v249, 0.0
    %257 = vadd.xlane.f32.xlu0 %v256
    %v258 = vpop.xlane.xlu0 %257
    %v259 = vsel %vm255, %v252, 0.0
    %260 = vadd.xlane.f32.xlu0 %v259
    %v261 = vpop.xlane.xlu0 %260
    %v262 = vld [vmem:[%s4] sm:$0x1]
    %v264 = vlaneseq
    %v265 = vshrl.u32 %v264, 7
    %v266 = vsub.s32 0, %v265
    %v267 = vrot.slane %v262, %v266
    %269 = vbcast.lane.b32.xlu0 %v267, 256
    %v270 = vpop.permute.xlu0 %269
    %v272 = vadd.f32 %v258, %v270
    %v273 = vadd.f32 %v261, %v270
    %v274 = vsub.f32 0.0, %v272
    %v275 = vsub.f32 0.0, %v273
    %v276 = vmul.f32 %v274, 1.442695
    %v277 = vpow.pop %v276
    %v278 = vmul.f32 %v275, 1.442695
    %v279 = vpow.pop %v278
    %v280 = vadd.f32 %v277, 1.0
    %v281 = vadd.f32 %v279, 1.0
    %v282 = vrcp.pop %v280
    %v283 = vrcp.pop %v281
    %286 = vset.pattern.permute.xlu0 0
    %287 = vperm.xlu0 %286, %v282
    %v288 = vpop.permute.xlu0 %287
    %289 = vset.pattern.permute.xlu0 0
    %290 = vperm.xlu0 %289, %v283
    %v291 = vpop.permute.xlu0 %290
    %v292 = vlaneseq
    %v293 = vshrl.u32 %v292, 7
    %v294 = vsub.s32 %v96, %v293
    %v295 = vrot.slane %v288, %v294
    %v296 = vlaneseq
    %v297 = vshrl.u32 %v296, 7
    %v298 = vsub.s32 %v96, %v297
    %v299 = vrot.slane %v291, %v298
    %v300 = vsel %vm113, %v299, %v295
    %302 = vst.msk [vmem:[#allocation5] sm:$0x3] %vm118, %v300
    // Predicated region
    $region26: #{tpu_custom_call.1} parent=1 // pred_check
      _
    $region27: #{tpu_custom_call.1} parent=1 // pred_check_branch
      %304 = sbr.rel (0) target = $region29
    $region28: #{tpu_custom_call.1} parent=1 // pred_region
      %s306 = ssub.s32 32, 32
      %307 = vsyncadd [#allocation4], %s306
      %s309 = sshll.u32 [#allocation5], 4
      %s310 = int_to_ptr.vmem [resolvable:$true] %s309
      %312 = dma.vmem_to_hbm [thread:$0]  %s310, 32, %s5, [#allocation4]
    $region29: #{tpu_custom_call.1} parent=1 // pred_fallthru
      _
    // Predicated region
    $region30: #{tpu_custom_call.1} parent=1 // pred_check
      _
    $region31: #{tpu_custom_call.1} parent=1 // pred_check_branch
      %314 = sbr.rel (0) target = $region33
    $region32: #{tpu_custom_call.1} parent=1 // pred_region
      %315 = dma.done [#allocation4], 32
    $region33: #{tpu_custom_call.1} parent=1 // pred_fallthru
      _
    %316 = vsyncpa [#allocation3], 1
    %317 = vsyncpa [#allocation4], 1

</llo_original>
